<compile_context>
chip_gen: v5e
topology: v5e:2x2
jax: 0.10.0
libtpu: 0.0.40
codegen_flags: <defaults>
</compile_context>

<pallas_src>
import functools

import jax
import jax.numpy as jnp
from jax import lax
from jax.experimental import pallas as pl
from jax.experimental.pallas import tpu as pltpu

# Finite sentinel: exp(sentinel - m) underflows cleanly to 0.  Safe because
# every tile row always has at least one unmasked column (only the single
# diagonal entry of a row is ever masked and TN >= 2), so m_new is always a
# "real" logit and alpha = exp(m_prev - m_new) never overflows.
_NEG_INF = -1e30


def _has_bf16_eup():
    # bf16 EUP (fast exp) exists on v6e / v7x; v5e and older have none.
    try:
        kind = jax.devices()[0].device_kind.lower()
    except Exception:
        return False
    return not any(tag in kind for tag in ("v2", "v3", "v4", "v5"))


def _instance_loss_kernel(z_row_ref, z_col_ref, z_par_ref, out_ref,
                          m_ref, l_ref, zrow_ref, *,
                          inv_temperature, guard_diag, exp_bf16):
    r = pl.program_id(0)
    c = pl.program_id(1)
    tm, d = z_row_ref.shape
    tn = z_col_ref.shape[0]

    @pl.when(c == 0)
    def _init():
        m_ref[...] = jnp.full_like(m_ref, _NEG_INF)
        l_ref[...] = jnp.zeros_like(l_ref)
        # Hoist the 1/T scaling of the (small) row operand out of the column
        # loop: scale once per row block, reuse for every column step.
        zrow_ref[...] = (z_row_ref[...].astype(jnp.float32)
                         * inv_temperature).astype(zrow_ref.dtype)

    # sim[i, j] = <z_i, z_j> / T : contract last dims, no explicit transpose.
    sim = lax.dot_general(
        zrow_ref[...], z_col_ref[...],
        dimension_numbers=(((1,), (1,)), ((), ())),
        preferred_element_type=jnp.float32,
    )                                                   # (TM, TN) f32

    def _mask_diag(s):
        row_ids = r * tm + lax.broadcasted_iota(jnp.int32, (tm, tn), 0)
        col_ids = c * tn + lax.broadcasted_iota(jnp.int32, (tm, tn), 1)
        return jnp.where(row_ids == col_ids, _NEG_INF, s)

    if guard_diag:
        # Multiple column blocks: only the overlapping tile carries the
        # diagonal -- skip the iota/compare/select elsewhere.
        overlaps = jnp.logical_and(r * tm < (c + 1) * tn,
                                   c * tn < (r + 1) * tm)
        sim = lax.cond(overlaps, _mask_diag, lambda s: s, sim)
    else:
        # Column axis is resident (TN == N): every tile holds the diagonal.
        sim = _mask_diag(sim)

    # Online logsumexp over the streamed column blocks (single step if TN==N).
    m_prev = m_ref[...]                                  # (TM, 1)
    m_new = jnp.maximum(m_prev, jnp.max(sim, axis=-1, keepdims=True))
    alpha = jnp.exp(m_prev - m_new)
    shifted = sim - m_new                                # all <= 0
    if exp_bf16:
        # v6e/v7x: bf16 EUP exp is ~2x f32; values are <= 0 post-shift so the
        # denominator accuracy loss is negligible.  Accumulation stays f32.
        p = jnp.exp(shifted.astype(jnp.bfloat16)).astype(jnp.float32)
    else:
        p = jnp.exp(shifted)
    l_ref[...] = alpha * l_ref[...] + jnp.sum(p, axis=-1, keepdims=True)
    m_ref[...] = m_new

    @pl.when(c == pl.num_programs(1) - 1)
    def _finalize():
        lse = m_ref[...] + jnp.log(l_ref[...])           # (TM, 1)
        # Positive logit <z_i, z_partner(i)> / T as an O(TM*D) row-wise dot
        # in f32 (partner rows come straight from z via the partner index_map).
        pos = jnp.sum(
            (z_row_ref[...].astype(jnp.float32) * inv_temperature)
            * z_par_ref[...].astype(jnp.float32),
            axis=-1, keepdims=True)
        out_ref[...] = lse - pos                         # per-row loss


def _pick_tiles(n, b, d, itemsize, *, vmem_budget_bytes):
    """Dtype-aware tile selection.

    Row tile: multiple of the sublane quantum, divides b (keeps partner rows
    block-aligned), prefers MXU-friendly 256/128.  Since tm <= b there are
    always >= 2 row blocks, so both v7x TensorCores get work.
    Column tile: the full n (z resident in VMEM, DMA'd once) whenever the
    double-buffered working set fits the budget; otherwise the largest
    128-multiple divisor of n that fits.
    """
    q = max(8, 32 // itemsize)          # 8 for f32, 16 for bf16, 32 for int8

    tm = None
    for cand in (256, 128):
        if cand % q == 0 and b % cand == 0:
            tm = cand
            break
    if tm is None:
        t = (min(b, 256) // q) * q
        while t >= q:
            if b % t == 0:
                tm = t
                break
            t -= q
    assert tm is not None, (n, b, q)

    def est_bytes(tn):
        return (2 * (tm + tn + tm) * d * itemsize   # double-buffered input blocks
                + 4 * tm * 128 * 4                  # out block + m/l scratch (lane-padded)
                + tm * d * itemsize)                # cached scaled row tile

    if est_bytes(n) <= vmem_budget_bytes:
        return tm, n
    step = 128 if n % 128 == 0 else q
    t = (n // step) * step
    while t >= step:
        if n % t == 0 and est_bytes(t) <= vmem_budget_bytes:
            return tm, t
        t -= step
    return tm, step


def instance_loss(z_i, z_j, temperature, *, matmul_dtype=None, tm=None, tn=None,
                  vmem_budget_bytes=24 * 1024 * 1024):
    assert z_i.shape == z_j.shape and z_i.ndim == 2
    b, d = z_i.shape
    n = 2 * b

    # z = [z_i; z_j]; partner(i) = (i + b) % n (partner rows are read straight
    # out of z via the partner index_map -- no z_par materialization).
    z = jnp.concatenate([z_i, z_j], axis=0)
    if matmul_dtype is not None and z.dtype != jnp.dtype(matmul_dtype):
        z = z.astype(matmul_dtype)      # e.g. force bf16 for full MXU rate

    itemsize = jnp.dtype(z.dtype).itemsize
    q = max(8, 32 // itemsize)
    assert b % q == 0, (
        f"batch_size={b} must be a multiple of {q} for dtype {z.dtype} "
        "(TPU sublane tiling + partner-block alignment)")

    auto_tm, auto_tn = _pick_tiles(n, b, d, itemsize,
                                   vmem_budget_bytes=vmem_budget_bytes)
    tm = auto_tm if tm is None else tm
    tn = auto_tn if tn is None else tn
    assert b % tm == 0 and tm % q == 0, (b, tm, q)
    assert n % tn == 0 and (tn % q == 0 or tn == n), (n, tn, q)

    n_row_blocks = n // tm
    n_col_blocks = n // tn

    kernel = functools.partial(
        _instance_loss_kernel,
        inv_temperature=1.0 / float(temperature),
        guard_diag=n_col_blocks > 1,
        exp_bf16=(z.dtype == jnp.bfloat16) and _has_bf16_eup(),
    )

    per_row = pl.pallas_call(
        kernel,
        out_shape=jax.ShapeDtypeStruct((n, 1), jnp.float32),
        grid_spec=pltpu.PrefetchScalarGridSpec(
            num_scalar_prefetch=0,
            grid=(n_row_blocks, n_col_blocks),
            in_specs=[
                # Row tile of z (fetched once per row block).
                pl.BlockSpec((tm, d), lambda r, c: (r, 0)),
                # Column tile of z.  With tn == n this is the whole z, its
                # block index never changes, so it is DMA'd once and stays
                # resident across the entire grid.
                pl.BlockSpec((tn, d), lambda r, c: (c, 0)),
                # Partner rows read directly from z (requires b % tm == 0).
                pl.BlockSpec((tm, d),
                             lambda r, c: ((r + b // tm) % n_row_blocks, 0)),
            ],
            out_specs=pl.BlockSpec((tm, 1), lambda r, c: (r, 0)),
            scratch_shapes=[
                pltpu.VMEM((tm, 1), jnp.float32),   # running max
                pltpu.VMEM((tm, 1), jnp.float32),   # running sum
                pltpu.VMEM((tm, d), z.dtype),       # row tile scaled by 1/T
            ],
        ),
        compiler_params=pltpu.CompilerParams(
            dimension_semantics=("parallel", "arbitrary"),
            # Above v5e's 16 MiB / v6e-v7x's 32 MiB default scoped limits,
            # safely below v7x's 64 MiB physical VMEM.
            vmem_limit_bytes=48 * 1024 * 1024,
        ),
    )(z, z, z)

    # Tiny final reduction over per-row partial losses (keeps rows parallel).
    return jnp.sum(per_row) / n


def _reference_instance_loss(z_i, z_j, temperature):
    # Plain-JAX replica of the PyTorch forward, for verification.
    b = z_i.shape[0]
    n = 2 * b
    z = jnp.concatenate([z_i, z_j], axis=0).astype(jnp.float32)
    sim = (z @ z.T) / temperature
    idx = jnp.arange(n)
    partner = (idx + b) % n
    pos = sim[idx, partner]
    sim_no_diag = jnp.where(jnp.eye(n, dtype=bool), -jnp.inf, sim)
    lse = jax.scipy.special.logsumexp(sim_no_diag, axis=-1)
    return jnp.sum(lse - pos) / n


if __name__ == "__main__":
    key = jax.random.PRNGKey(0)
    k1, k2, k3, k4 = jax.random.split(key, 4)
    temperature = 0.5

    # --- f32 inputs, default path (column-resident, 2 row blocks) ------------
    batch, hidden = 8, 32
    z_i = jax.random.normal(k1, (batch, hidden), dtype=jnp.float32)
    z_j = jax.random.normal(k2, (batch, hidden), dtype=jnp.float32)
    ref = _reference_instance_loss(z_i, z_j, temperature)

    loss_default = instance_loss(z_i, z_j, temperature)
    jax.block_until_ready(loss_default)
    assert jnp.allclose(loss_default, ref, rtol=1e-4, atol=1e-5), (loss_default, ref)

    # --- f32 inputs, forced multi-column flash path (2x2 grid): exercises the
    #     online logsumexp, the diagonal-overlap guard, and the partner wrap.
    loss_tiled = instance_loss(z_i, z_j, temperature, tm=8, tn=8)
    jax.block_until_ready(loss_tiled)
    assert jnp.allclose(loss_tiled, ref, rtol=1e-4, atol=1e-5), (loss_tiled, ref)

    # --- bf16 inputs: full-rate MXU path (+ bf16 EUP exp on v6e/v7x) ----------
    batch2, hidden2 = 16, 64
    z_i2 = jax.random.normal(k3, (batch2, hidden2), dtype=jnp.float32)
    z_j2 = jax.random.normal(k4, (batch2, hidden2), dtype=jnp.float32)
    ref2 = _reference_instance_loss(z_i2, z_j2, temperature)

    loss_bf16 = instance_loss(z_i2.astype(jnp.bfloat16),
                              z_j2.astype(jnp.bfloat16), temperature)
    jax.block_until_ready(loss_bf16)
    assert jnp.allclose(loss_bf16, ref2, rtol=5e-2, atol=5e-2), (loss_bf16, ref2)

    # --- f32 inputs forced onto the bf16 MXU path (review's recommendation) ---
    loss_forced = instance_loss(z_i2, z_j2, temperature, matmul_dtype=jnp.bfloat16)
    jax.block_until_ready(loss_forced)
    assert jnp.allclose(loss_forced, ref2, rtol=5e-2, atol=5e-2), (loss_forced, ref2)

    print("KERNEL_OK")
</pallas_src>

<mosaic_0001>
module attributes {stable_mosaic.version = 11 : i64} {
  func.func @_instance_loss_kernel(%arg0: i32, %arg1: i32, %arg2: memref<8x32xf32, #tpu.memory_space<vmem>>, %arg3: memref<16x32xf32, #tpu.memory_space<vmem>>, %arg4: memref<8x32xf32, #tpu.memory_space<vmem>>, %arg5: memref<8x1xf32, #tpu.memory_space<vmem>>, %arg6: memref<8x1xf32, #tpu.memory_space<vmem>>, %arg7: memref<8x1xf32, #tpu.memory_space<vmem>>, %arg8: memref<8x32xf32, #tpu.memory_space<vmem>>) attributes {dimension_semantics = [#tpu.dimension_semantics<parallel>, #tpu.dimension_semantics<arbitrary>], iteration_bounds = array<i64: 2, 1>, scalar_prefetch = 0 : i64, scratch_operands = 3 : i64, tpu.core_type = #tpu.core_type<tc>, window_params = [{transform_indices = @transform_0, window_bounds = array<i64: 8, 32>}, {transform_indices = @transform_1, window_bounds = array<i64: 16, 32>}, {transform_indices = @transform_2, window_bounds = array<i64: 8, 32>}, {transform_indices = @transform_3, window_bounds = array<i64: 8, 1>}]} {
    %c0_i32 = arith.constant 0 : i32
    %0 = arith.cmpi eq, %arg1, %c0_i32 : i32
    %1 = arith.extui %0 : i1 to i32
    %c0_i32_0 = arith.constant 0 : i32
    %2 = arith.cmpi ne, %1, %c0_i32_0 : i32
    scf.if %2 {
      %cst_17 = arith.constant -1.000000e+30 : f32
      %36 = vector.broadcast %cst_17 : f32 to vector<8x1xf32>
      %c0_18 = arith.constant 0 : index
      %c0_19 = arith.constant 0 : index
      %37 = vector.load %arg6[%c0_18, %c0_19] : memref<8x1xf32, #tpu.memory_space<vmem>>, vector<8x1xf32>
      tpu.vector_store %arg6[%c0_18, %c0_19], %36 {strides = array<i32>} : memref<8x1xf32, #tpu.memory_space<vmem>>, vector<8x1xf32>,
      %cst_20 = arith.constant 0.000000e+00 : f32
      %38 = vector.broadcast %cst_20 : f32 to vector<8x1xf32>
      %c0_21 = arith.constant 0 : index
      %c0_22 = arith.constant 0 : index
      %39 = vector.load %arg7[%c0_21, %c0_22] : memref<8x1xf32, #tpu.memory_space<vmem>>, vector<8x1xf32>
      tpu.vector_store %arg7[%c0_21, %c0_22], %38 {strides = array<i32>} : memref<8x1xf32, #tpu.memory_space<vmem>>, vector<8x1xf32>,
      %c0_23 = arith.constant 0 : index
      %c0_24 = arith.constant 0 : index
      %40 = vector.load %arg2[%c0_23, %c0_24] : memref<8x32xf32, #tpu.memory_space<vmem>>, vector<8x32xf32>
      %cst_25 = arith.constant 2.000000e+00 : f32
      %41 = vector.broadcast %cst_25 : f32 to vector<8x32xf32>
      %42 = arith.mulf %40, %41 : vector<8x32xf32>
      %c0_26 = arith.constant 0 : index
      %c0_27 = arith.constant 0 : index
      %43 = vector.load %arg8[%c0_26, %c0_27] : memref<8x32xf32, #tpu.memory_space<vmem>>, vector<8x32xf32>
      tpu.vector_store %arg8[%c0_26, %c0_27], %42 {strides = array<i32>} : memref<8x32xf32, #tpu.memory_space<vmem>>, vector<8x32xf32>,
    } else {
    }
    %c0 = arith.constant 0 : index
    %c0_1 = arith.constant 0 : index
    %3 = vector.load %arg8[%c0, %c0_1] : memref<8x32xf32, #tpu.memory_space<vmem>>, vector<8x32xf32>
    %c0_2 = arith.constant 0 : index
    %c0_3 = arith.constant 0 : index
    %4 = vector.load %arg3[%c0_2, %c0_3] : memref<16x32xf32, #tpu.memory_space<vmem>>, vector<16x32xf32>
    %cst = arith.constant dense<0.000000e+00> : vector<8x16xf32>
    %5 = tpu.matmul %3, %4, %cst {dimension_numbers = #tpu.dot_dimension_numbers<[1], [1], [0], [0], [0, 0, 1, 0], [], []>} : vector<8x32xf32>, vector<16x32xf32>, vector<8x16xf32> -> vector<8x16xf32>
    %c8_i32 = arith.constant 8 : i32
    %6 = arith.muli %arg0, %c8_i32 : i32
    %7 = tpu.iota {dimensions = array<i32: 0>} : vector<8x16xi32>
    %8 = vector.broadcast %6 : i32 to vector<8x16xi32>
    %9 = arith.addi %8, %7 : vector<8x16xi32>
    %c16_i32 = arith.constant 16 : i32
    %10 = arith.muli %arg1, %c16_i32 : i32
    %11 = tpu.iota {dimensions = array<i32: 1>} : vector<8x16xi32>
    %12 = vector.broadcast %10 : i32 to vector<8x16xi32>
    %13 = arith.addi %12, %11 : vector<8x16xi32>
    %14 = arith.cmpi eq, %9, %13 : vector<8x16xi32>
    %cst_4 = arith.constant -1.000000e+30 : f32
    %15 = vector.broadcast %cst_4 : f32 to vector<8x16xf32>
    %16 = arith.select %14, %15, %5 : vector<8x16xi1>, vector<8x16xf32>
    %c0_5 = arith.constant 0 : index
    %c0_6 = arith.constant 0 : index
    %17 = vector.load %arg6[%c0_5, %c0_6] : memref<8x1xf32, #tpu.memory_space<vmem>>, vector<8x1xf32>
    %cst_7 = arith.constant dense<0xFF800000> : vector<8xf32>
    %18 = vector.multi_reduction <maximumf>, %16, %cst_7 [1] : vector<8x16xf32> to vector<8xf32>
    %19 = vector.shape_cast %18 : vector<8xf32> to vector<8x1xf32>
    %20 = arith.maximumf %17, %19 : vector<8x1xf32>
    %21 = arith.subf %17, %20 : vector<8x1xf32>
    %22 = math.exp %21 : vector<8x1xf32>
    %23 = vector.broadcast %20 : vector<8x1xf32> to vector<8x16xf32>
    %24 = arith.subf %16, %23 : vector<8x16xf32>
    %25 = math.exp %24 : vector<8x16xf32>
    %c0_8 = arith.constant 0 : index
    %c0_9 = arith.constant 0 : index
    %26 = vector.load %arg7[%c0_8, %c0_9] : memref<8x1xf32, #tpu.memory_space<vmem>>, vector<8x1xf32>
    %27 = arith.mulf %22, %26 : vector<8x1xf32>
    %cst_10 = arith.constant dense<0.000000e+00> : vector<8xf32>
    %28 = vector.multi_reduction <add>, %25, %cst_10 [1] : vector<8x16xf32> to vector<8xf32>
    %29 = vector.shape_cast %28 : vector<8xf32> to vector<8x1xf32>
    %30 = arith.addf %27, %29 : vector<8x1xf32>
    %c0_11 = arith.constant 0 : index
    %c0_12 = arith.constant 0 : index
    %31 = vector.load %arg7[%c0_11, %c0_12] : memref<8x1xf32, #tpu.memory_space<vmem>>, vector<8x1xf32>
    tpu.vector_store %arg7[%c0_11, %c0_12], %30 {strides = array<i32>} : memref<8x1xf32, #tpu.memory_space<vmem>>, vector<8x1xf32>,
    %c0_13 = arith.constant 0 : index
    %c0_14 = arith.constant 0 : index
    %32 = vector.load %arg6[%c0_13, %c0_14] : memref<8x1xf32, #tpu.memory_space<vmem>>, vector<8x1xf32>
    tpu.vector_store %arg6[%c0_13, %c0_14], %20 {strides = array<i32>} : memref<8x1xf32, #tpu.memory_space<vmem>>, vector<8x1xf32>,
    %c0_i32_15 = arith.constant 0 : i32
    %33 = arith.cmpi eq, %arg1, %c0_i32_15 : i32
    %34 = arith.extui %33 : i1 to i32
    %c0_i32_16 = arith.constant 0 : i32
    %35 = arith.cmpi ne, %34, %c0_i32_16 : i32
    scf.if %35 {
      %c0_17 = arith.constant 0 : index
      %c0_18 = arith.constant 0 : index
      %36 = vector.load %arg6[%c0_17, %c0_18] : memref<8x1xf32, #tpu.memory_space<vmem>>, vector<8x1xf32>
      %c0_19 = arith.constant 0 : index
      %c0_20 = arith.constant 0 : index
      %37 = vector.load %arg7[%c0_19, %c0_20] : memref<8x1xf32, #tpu.memory_space<vmem>>, vector<8x1xf32>
      %38 = math.log %37 : vector<8x1xf32>
      %39 = arith.addf %36, %38 : vector<8x1xf32>
      %c0_21 = arith.constant 0 : index
      %c0_22 = arith.constant 0 : index
      %40 = vector.load %arg2[%c0_21, %c0_22] : memref<8x32xf32, #tpu.memory_space<vmem>>, vector<8x32xf32>
      %cst_23 = arith.constant 2.000000e+00 : f32
      %41 = vector.broadcast %cst_23 : f32 to vector<8x32xf32>
      %42 = arith.mulf %40, %41 : vector<8x32xf32>
      %c0_24 = arith.constant 0 : index
      %c0_25 = arith.constant 0 : index
      %43 = vector.load %arg4[%c0_24, %c0_25] : memref<8x32xf32, #tpu.memory_space<vmem>>, vector<8x32xf32>
      %44 = arith.mulf %42, %43 : vector<8x32xf32>
      %cst_26 = arith.constant dense<0.000000e+00> : vector<8xf32>
      %45 = vector.multi_reduction <add>, %44, %cst_26 [1] : vector<8x32xf32> to vector<8xf32>
      %46 = vector.shape_cast %45 : vector<8xf32> to vector<8x1xf32>
      %47 = arith.subf %39, %46 : vector<8x1xf32>
      %c0_27 = arith.constant 0 : index
      %c0_28 = arith.constant 0 : index
      %48 = vector.load %arg5[%c0_27, %c0_28] : memref<8x1xf32, #tpu.memory_space<vmem>>, vector<8x1xf32>
      tpu.vector_store %arg5[%c0_27, %c0_28], %47 {strides = array<i32>} : memref<8x1xf32, #tpu.memory_space<vmem>>, vector<8x1xf32>,
    } else {
    }
    return
  }
  func.func @transform_0(%arg0: i32, %arg1: i32) -> (i32, i32) {
    %c0_i32 = arith.constant 0 : i32
    %c0_i32_0 = arith.constant 0 : i32
    return %arg0, %c0_i32 : i32, i32
  }
  func.func @transform_1(%arg0: i32, %arg1: i32) -> (i32, i32) {
    %c0_i32 = arith.constant 0 : i32
    %c0_i32_0 = arith.constant 0 : i32
    return %arg1, %c0_i32 : i32, i32
  }
  func.func @transform_2(%arg0: i32, %arg1: i32) -> (i32, i32) {
    %c1_i32 = arith.constant 1 : i32
    %0 = arith.addi %arg0, %c1_i32 : i32
    %c2_i32 = arith.constant 2 : i32
    %c0_i32 = arith.constant 0 : i32
    %1 = arith.cmpi eq, %c2_i32, %c0_i32 : i32
    %c1_i32_0 = arith.constant 1 : i32
    %2 = arith.select %1, %c1_i32_0, %c2_i32 : i32
    %3 = arith.remsi %0, %2 : i32
    %c0_i32_1 = arith.constant 0 : i32
    %4 = arith.cmpi ne, %3, %c0_i32_1 : i32
    %c0_i32_2 = arith.constant 0 : i32
    %5 = arith.cmpi slt, %3, %c0_i32_2 : i32
    %c0_i32_3 = arith.constant 0 : i32
    %6 = arith.cmpi slt, %2, %c0_i32_3 : i32
    %7 = arith.xori %5, %6 : i1
    %8 = arith.andi %7, %4 : i1
    %9 = arith.addi %3, %2 : i32
    %10 = arith.select %8, %9, %3 : i32
    %c0_i32_4 = arith.constant 0 : i32
    %c0_i32_5 = arith.constant 0 : i32
    return %10, %c0_i32_4 : i32, i32
  }
  func.func @transform_3(%arg0: i32, %arg1: i32) -> (i32, i32) {
    %c0_i32 = arith.constant 0 : i32
    %c0_i32_0 = arith.constant 0 : i32
    return %arg0, %c0_i32 : i32, i32
  }
}

</mosaic_0001>

<llo_original>
// kernel: tpu_custom_call.1
$region0: #{tpu_custom_call.1}
  #allocation0 [shape = 'u32[]', space=smem, size = 0x4, offset = 0x4, fixed_abs, tag = 'smem constant byte address 0x4 - core index']
  #allocation1 [shape = 'u32[72,128]{1,0:T(1,128)}', space=vmem, size = 0x9000, scoped, tag = 'internal scratch']
  #allocation2 [shape = 'f32[8,1]{1,0:T(8,128)}', space=vmem, size = 0x1000, scoped, tag = 'scratch operand']
  #allocation3 [shape = 'f32[8,1]{1,0:T(8,128)}', space=vmem, size = 0x1000, scoped, tag = 'scratch operand']
  #allocation4 [shape = 'f32[8,32]{1,0:T(8,128)}', space=vmem, size = 0x1000, scoped, tag = 'scratch operand']
  %s0 = inlined_call_operand.hbm [shape: f32[16,32], index: 0, kind: input, shape index: {}]
  %s1 = inlined_call_operand.hbm [shape: f32[16,32], index: 1, kind: input, shape index: {}]
  %s2 = inlined_call_operand.hbm [shape: f32[16,32], index: 2, kind: input, shape index: {}]
  %s3 = inlined_call_operand.vmem [shape: f32[16,1], index: 3, kind: output, shape index: {}]
  %s4 = sld [smem:[#allocation0]]
  $region65: #{tpu_custom_call.1} parent=0
    _
  %s6 = ssub.s32 1, %s4
  %s7 = scalar_select 0, %s6, %s4
  $region1: #{tpu_custom_call.1} parent=0
    #allocation5 [shape = 'u8[8192]{0}', space=vmem, size = 0x2000, scoped, tag = 'input window, operand 0']
    #allocation6 [shape = 's32[2]{0}', space=sflag, size = 0x8, scoped, tag = 'scoped memory for tpu_custom_call.1']
    #allocation7 [shape = 'u8[8192]{0}', space=vmem, size = 0x2000, scoped, tag = 'input window, operand 1, single buffered']
    #allocation8 [shape = 's32[1]{0}', space=sflag, size = 0x4, scoped, tag = 'scoped memory for tpu_custom_call.1']
    #allocation9 [shape = 'u8[8192]{0}', space=vmem, size = 0x2000, scoped, tag = 'input window, operand 2']
    %8 = vsyncpa [#allocation6], 0
    %s9 = scalar_lea.sflag [#allocation6], 1
    %10 = vsyncpa %s9, 0
    %11 = vsyncpa [#allocation8], 0
    loop: start=0, step=1, limit=4
    $region2: #{tpu_custom_call.1} parent=1 // loop_pre_header
      _
    $region3: #{tpu_custom_call.1} parent=1 // loop_header
      %s13 = sphi 0, %s17
      %p14 = scmp.ge.s32.totalorder %s13, 4
      %s20 = sphi 0, %s32
      %s21 = sphi 0, %s28
      %s22 = sphi 0, %s20
      %s23 = sphi 0, %s21
      %s24 = sphi 0, %s22
      %s25 = sphi 0, %s23
      %s35 = sphi 0, %s37
      %s38 = sphi 0, %s35
      %s39 = sphi 0, %s38
      %s55 = sphi 0, %s39
      %s61 = sphi 0, %s63
      %s64 = sphi 0, %s61
      %s65 = sphi 0, %s64
      %s81 = sphi 0, %s65
      %s113 = sphi 0, %s115
      %s116 = sphi 0, %s113
      %s117 = sphi 0, %s116
      %s133 = sphi 0, %s117
      %s139 = sphi 0, %s141
      %s142 = sphi 0, %s139
      %s143 = sphi 0, %s142
      %s159 = sphi 0, %s143
    $region4: #{tpu_custom_call.1} parent=1 // loop_header_branch
      %16 = sbr.rel (%p14) target = $region8
    $region5: #{tpu_custom_call.1} parent=1 // loop_body
      %s18 = ssub.s32 %s13, 1
      %s19 = ssub.s32 %s13, 2
      %s26 = sadd.s32 1, %s21
      %p27 = scmp.ge.s32.totalorder %s26, 1
      %s28 = scalar_select %p27, 0, %s26
      %s29 = sadd.s32 1, %s20
      %s30 = scalar_select %p27, %s29, %s20
      %p31 = scmp.ge.s32.totalorder %s30, 2
      %s32 = scalar_select %p31, 0, %s30
      %s33 = ssub.s32 %s20, %s32
      %p34 = scmp.eq.s32.totalorder %s33, 0
      %s36 = sadd.s32 %s35, 1
      %s37 = scalar_select %p34, %s35, %s36
      %p40 = pneg %p34
      %p41 = scmp.eq.s32.totalorder %s13, 1
      %p42 = por %p40, %p41
      %p43 = scmp.ne.s32.totalorder %s35, %s38
      %p44 = scmp.eq.s32.totalorder %s13, 0
      %p45 = por %p43, %p44
      %p46 = scmp.ne.s32.totalorder %s35, %s38
      %p47 = scmp.eq.s32.totalorder %s18, 1
      %p48 = por %p46, %p47
      %p49 = scmp.ne.s32.totalorder %s38, %s39
      %p50 = scmp.eq.s32.totalorder %s18, 0
      %p51 = por %p49, %p50
      %p52 = scmp.ne.s32.totalorder %s38, %s39
      %p53 = scmp.eq.s32.totalorder %s19, 1
      %p54 = por %p52, %p53
      %p56 = scmp.ne.s32.totalorder %s39, %s55
      %p57 = scmp.eq.s32.totalorder %s19, 0
      %p58 = por %p56, %p57
      %s59 = ssub.s32 %s21, %s28
      %p60 = scmp.eq.s32.totalorder %s59, 0
      %s62 = sadd.s32 %s61, 1
      %s63 = scalar_select %p60, %s61, %s62
      %p66 = pneg %p60
      %p67 = scmp.eq.s32.totalorder %s13, 1
      %p68 = por %p66, %p67
      %p69 = scmp.ne.s32.totalorder %s61, %s64
      %p70 = scmp.eq.s32.totalorder %s13, 0
      %p71 = por %p69, %p70
      %p72 = scmp.ne.s32.totalorder %s61, %s64
      %p73 = scmp.eq.s32.totalorder %s18, 1
      %p74 = por %p72, %p73
      %p75 = scmp.ne.s32.totalorder %s64, %s65
      %p76 = scmp.eq.s32.totalorder %s18, 0
      %p77 = por %p75, %p76
      %p78 = scmp.ne.s32.totalorder %s64, %s65
      %p79 = scmp.eq.s32.totalorder %s19, 1
      %p80 = por %p78, %p79
      %p82 = scmp.ne.s32.totalorder %s65, %s81
      %p83 = scmp.eq.s32.totalorder %s19, 0
      %p84 = por %p82, %p83
      %s85 = sadd.s32 %s20, 1
      %p86 = scmp.lt.s32.totalorder %s85, 0
      %s87 = ssub.s32 0, %s85
      %s88 = scalar_select %p86, %s87, %s85
      %s89 = sand.u32 %s88, 1
      %s90 = ssub.s32 0, %s89
      %s91 = scalar_select %p86, %s90, %s89
      %p92 = scmp.ne.s32.totalorder %s91, 0
      %p93 = scmp.lt.s32.totalorder %s91, 0
      %p94 = pnand %p93, %p92
      %p95 = pneg %p94
      %s96 = sadd.s32 %s91, 2
      %s97 = scalar_select %p95, %s96, %s91
      %s98 = sadd.s32 %s32, 1
      %p99 = scmp.lt.s32.totalorder %s98, 0
      %s100 = ssub.s32 0, %s98
      %s101 = scalar_select %p99, %s100, %s98
      %s102 = sand.u32 %s101, 1
      %s103 = ssub.s32 0, %s102
      %s104 = scalar_select %p99, %s103, %s102
      %p105 = scmp.ne.s32.totalorder %s104, 0
      %p106 = scmp.lt.s32.totalorder %s104, 0
      %p107 = pnand %p106, %p105
      %p108 = pneg %p107
      %s109 = sadd.s32 %s104, 2
      %s110 = scalar_select %p108, %s109, %s104
      %s111 = ssub.s32 %s97, %s110
      %p112 = scmp.eq.s32.totalorder %s111, 0
      %s114 = sadd.s32 %s113, 1
      %s115 = scalar_select %p112, %s113, %s114
      %p118 = pneg %p112
      %p119 = scmp.eq.s32.totalorder %s13, 1
      %p120 = por %p118, %p119
      %p121 = scmp.ne.s32.totalorder %s113, %s116
      %p122 = scmp.eq.s32.totalorder %s13, 0
      %p123 = por %p121, %p122
      %p124 = scmp.ne.s32.totalorder %s113, %s116
      %p125 = scmp.eq.s32.totalorder %s18, 1
      %p126 = por %p124, %p125
      %p127 = scmp.ne.s32.totalorder %s116, %s117
      %p128 = scmp.eq.s32.totalorder %s18, 0
      %p129 = por %p127, %p128
      %p130 = scmp.ne.s32.totalorder %s116, %s117
      %p131 = scmp.eq.s32.totalorder %s19, 1
      %p132 = por %p130, %p131
      %p134 = scmp.ne.s32.totalorder %s117, %s133
      %p135 = scmp.eq.s32.totalorder %s19, 0
      %p136 = por %p134, %p135
      %s137 = ssub.s32 %s20, %s32
      %p138 = scmp.eq.s32.totalorder %s137, 0
      %s140 = sadd.s32 %s139, 1
      %s141 = scalar_select %p138, %s139, %s140
      %p144 = pneg %p138
      %p145 = scmp.eq.s32.totalorder %s13, 1
      %p146 = por %p144, %p145
      %p147 = scmp.ne.s32.totalorder %s139, %s142
      %p148 = scmp.eq.s32.totalorder %s13, 0
      %p149 = por %p147, %p148
      %p150 = scmp.ne.s32.totalorder %s139, %s142
      %p151 = scmp.eq.s32.totalorder %s18, 1
      %p152 = por %p150, %p151
      %p153 = scmp.ne.s32.totalorder %s142, %s143
      %p154 = scmp.eq.s32.totalorder %s18, 0
      %p155 = por %p153, %p154
      %p156 = scmp.ne.s32.totalorder %s142, %s143
      %p157 = scmp.eq.s32.totalorder %s19, 1
      %p158 = por %p156, %p157
      %p160 = scmp.ne.s32.totalorder %s143, %s159
      %p161 = scmp.eq.s32.totalorder %s19, 0
      %p162 = por %p160, %p161
      %p163 = scmp.le.s32.totalorder 1, %s13
      %p164 = scmp.lt.s32.totalorder %s13, 3
      %p165 = pnand %p163, %p164
      %p166 = pneg %p165
      // Predicated region
      $region9: #{tpu_custom_call.1} parent=5 // pred_check
        _
      $region10: #{tpu_custom_call.1} parent=5 // pred_check_branch
        %168 = sbr.rel (%p165) target = $region12
      $region11: #{tpu_custom_call.1} parent=5 // pred_region
        %s169 = ssub.s32 %s13, 1
        // Predicated region
        $region13: #{tpu_custom_call.1} parent=11 // pred_check
          %p170 = pneg %p77
        $region14: #{tpu_custom_call.1} parent=11 // pred_check_branch
          %172 = sbr.rel (%p170) target = $region16
        $region15: #{tpu_custom_call.1} parent=11 // pred_region
          %s173 = smul.u32 2, %s23
          %175 = vsyncadd [#allocation8], 0
          %s176 = smul.addr %s173, 8
          %s177 = scalar_lea.hbm %s1, %s176
          %s178 = sshll.u32 %s177, 4
          %s179 = int_to_ptr.hbm [resolvable:$true] %s178
          %s180 = sshll.u32 [#allocation7], 4
          %s181 = int_to_ptr.vmem [resolvable:$true] %s180
          %186 = dma.hbm_to_vmem [thread:$0]  %s179, 256, %s181, [#allocation8], 128, 128, 8
        $region16: #{tpu_custom_call.1} parent=11 // pred_fallthru
          _
      $region12: #{tpu_custom_call.1} parent=5 // pred_fallthru
        _
      %p187 = scmp.lt.s32.totalorder %s13, 2
      // Predicated region
      $region17: #{tpu_custom_call.1} parent=5 // pred_check
        %p188 = pneg %p187
      $region18: #{tpu_custom_call.1} parent=5 // pred_check_branch
        %190 = sbr.rel (%p188) target = $region20
      $region19: #{tpu_custom_call.1} parent=5 // pred_region
        // Predicated region
        $region21: #{tpu_custom_call.1} parent=19 // pred_check
          %p191 = pneg %p45
        $region22: #{tpu_custom_call.1} parent=19 // pred_check_branch
          %193 = sbr.rel (%p191) target = $region24
        $region23: #{tpu_custom_call.1} parent=19 // pred_region
          %s194 = sand.u32 %s13, 1
          %s195 = scalar_lea.sflag [#allocation6], %s194
          %s196 = sand.u32 %s35, 1
          %s197 = smul.addr %s196, 8
          %s198 = scalar_lea.vmem [#allocation5], %s197
          %200 = vsyncadd %s195, 0
          %s201 = smul.addr %s20, 8
          %s202 = scalar_lea.hbm %s0, %s201
          %s204 = sshll.u32 %s202, 4
          %s205 = int_to_ptr.hbm [resolvable:$true] %s204
          %s206 = sshll.u32 %s198, 4
          %s207 = int_to_ptr.vmem [resolvable:$true] %s206
          %209 = dma.hbm_to_vmem [thread:$0]  %s205, 128, %s207, %s195
        $region24: #{tpu_custom_call.1} parent=19 // pred_fallthru
          _
        // Predicated region
        $region25: #{tpu_custom_call.1} parent=19 // pred_check
          %p210 = pneg %p123
        $region26: #{tpu_custom_call.1} parent=19 // pred_check_branch
          %212 = sbr.rel (%p210) target = $region28
        $region27: #{tpu_custom_call.1} parent=19 // pred_region
          %s213 = sand.u32 %s13, 1
          %s214 = scalar_lea.sflag [#allocation6], %s213
          %s215 = sand.u32 %s113, 1
          %s216 = smul.addr %s215, 8
          %s217 = scalar_lea.vmem [#allocation9], %s216
          %s218 = sadd.s32 %s20, 1
          %p219 = scmp.lt.s32.totalorder %s218, 0
          %s220 = ssub.s32 0, %s218
          %s221 = scalar_select %p219, %s220, %s218
          %s222 = sand.u32 %s221, 1
          %s223 = ssub.s32 0, %s222
          %s224 = scalar_select %p219, %s223, %s222
          %p225 = scmp.ne.s32.totalorder %s224, 0
          %p226 = scmp.lt.s32.totalorder %s224, 0
          %p227 = pnand %p226, %p225
          %p228 = pneg %p227
          %s229 = sadd.s32 %s224, 2
          %s230 = scalar_select %p228, %s229, %s224
          %232 = vsyncadd %s214, 0
          %s233 = smul.addr %s230, 8
          %s234 = scalar_lea.hbm %s2, %s233
          %s236 = sshll.u32 %s234, 4
          %s237 = int_to_ptr.hbm [resolvable:$true] %s236
          %s238 = sshll.u32 %s217, 4
          %s239 = int_to_ptr.vmem [resolvable:$true] %s238
          %241 = dma.hbm_to_vmem [thread:$0]  %s237, 128, %s239, %s214
        $region28: #{tpu_custom_call.1} parent=19 // pred_fallthru
          _
      $region20: #{tpu_custom_call.1} parent=5 // pred_fallthru
        _
      %p242 = scmp.le.s32.totalorder 1, %s13
      %p243 = scmp.lt.s32.totalorder %s13, 3
      %p244 = pnand %p242, %p243
      %p245 = pneg %p244
      // Predicated region
      $region29: #{tpu_custom_call.1} parent=5 // pred_check
        _
      $region30: #{tpu_custom_call.1} parent=5 // pred_check_branch
        %247 = sbr.rel (%p244) target = $region32
      $region31: #{tpu_custom_call.1} parent=5 // pred_region
        %s248 = ssub.s32 %s13, 1
        %s249 = sand.u32 %s18, 1
        %s250 = scalar_lea.sflag [#allocation6], %s249
        %s251 = sand.u32 %s38, 1
        %s252 = smul.addr %s251, 8
        %s253 = scalar_lea.vmem [#allocation5], %s252
        // Predicated region
        $region33: #{tpu_custom_call.1} parent=31 // pred_check
          %p254 = pneg %p51
        $region34: #{tpu_custom_call.1} parent=31 // pred_check_branch
          %256 = sbr.rel (%p254) target = $region36
        $region35: #{tpu_custom_call.1} parent=31 // pred_region
          %258 = dma.done %s250, 128
        $region36: #{tpu_custom_call.1} parent=31 // pred_fallthru
          _
        // Predicated region
        $region37: #{tpu_custom_call.1} parent=31 // pred_check
          %p259 = pneg %p77
        $region38: #{tpu_custom_call.1} parent=31 // pred_check_branch
          %261 = sbr.rel (%p259) target = $region40
        $region39: #{tpu_custom_call.1} parent=31 // pred_region
          %263 = dma.done [#allocation8], 256
        $region40: #{tpu_custom_call.1} parent=31 // pred_fallthru
          _
        %s264 = sand.u32 %s18, 1
        %s265 = scalar_lea.sflag [#allocation6], %s264
        %s266 = sand.u32 %s116, 1
        %s267 = smul.addr %s266, 8
        %s268 = scalar_lea.vmem [#allocation9], %s267
        // Predicated region
        $region41: #{tpu_custom_call.1} parent=31 // pred_check
          %p269 = pneg %p129
        $region42: #{tpu_custom_call.1} parent=31 // pred_check_branch
          %271 = sbr.rel (%p269) target = $region44
        $region43: #{tpu_custom_call.1} parent=31 // pred_region
          %273 = dma.done %s265, 128
        $region44: #{tpu_custom_call.1} parent=31 // pred_fallthru
          _
        %s274 = sand.u32 %s18, 1
        %s275 = scalar_lea.sflag [#allocation6], %s274
        %s276 = sand.u32 %s38, 1
        %s277 = smul.addr %s276, 8
        %s278 = scalar_lea.vmem [#allocation5], %s277
        %p279 = pneg %p51
        %p280 = pneg %p48
        %p281 = pneg %p77
        %p282 = pneg %p74
        %s283 = sand.u32 %s18, 1
        %s284 = scalar_lea.sflag [#allocation6], %s283
        %s285 = sand.u32 %s116, 1
        %s286 = smul.addr %s285, 8
        %s287 = scalar_lea.vmem [#allocation9], %s286
        %p288 = pneg %p129
        %p289 = pneg %p126
        %p290 = pneg %p155
        %p291 = pneg %p152
        %p292 = scmp.lt.s32.totalorder %s22, 1
        %s293 = scalar_select %p292, %s22, 1
        %s294 = smul.addr %s293, 8
        %s295 = scalar_lea.vmem %s3, %s294
        %s296 = smul.u32 2, %s23
        %s297 = sadd.s32 %s22, 1
        %p298 = scmp.lt.s32.totalorder %s297, 0
        %s299 = ssub.s32 0, %s297
        %s300 = scalar_select %p298, %s299, %s297
        %s301 = sand.u32 %s300, 1
        %s302 = ssub.s32 0, %s301
        %s303 = scalar_select %p298, %s302, %s301
        %p304 = scmp.ne.s32.totalorder %s303, 0
        %p305 = scmp.lt.s32.totalorder %s303, 0
        %p306 = pnand %p305, %p304
        %p307 = pneg %p306
        %s308 = sadd.s32 %s303, 2
        %s309 = scalar_select %p307, %s308, %s303
        %p310 = scmp.lt.s32.totalorder %s22, 1
        %s311 = scalar_select %p310, %s22, 1
        %s312 = smul.addr %s311, 8
        %s313 = scalar_lea.vmem %s3, %s312
        %p314 = scmp.eq.s32.totalorder %s23, 0
        // Predicated region
        $region45: #{tpu_custom_call.1} parent=31 // pred_check
          %p315 = pneg %p314
        $region46: #{tpu_custom_call.1} parent=31 // pred_check_branch
          %317 = sbr.rel (%p315) target = $region48
        $region47: #{tpu_custom_call.1} parent=31 // pred_region
          %vm318 = vcmask 7168
          %319 = vst.msk [vmem:[#allocation2] sm:$0xff] %vm318, -1e+30
          %320 = vst.msk [vmem:[#allocation3] sm:$0xff] %vm318, 0.0
          %v321 = vld [vmem:[%s253] sm:$0xff]
          %v322 = vmul.f32 %v321, 2.0
          %vm323 = vcmask 261120
          %324 = vst.msk [vmem:[#allocation4] sm:$0xff] %vm323, %v322
        $region48: #{tpu_custom_call.1} parent=31 // pred_fallthru
          _
        %v325 = vld [vmem:[#allocation4] sm:$0xff]
        %v326 = vld [vmem:[#allocation7] sm:$0xff]
        %v327 = vld [vmem:[#allocation7 + $0x8] sm:$0xff]
        %vm328 = vcmask 261120
        %v330 = vsel %vm328, %v325, 0
        %v333 = vsel %vm328, %v326, 0
        %v336 = vsel %vm328, %v327, 0
        %338 = vmatpush.xpose.msra.mxu0 0.0
        %339 = vmatpush.xpose.msra.mxu0 0.0
        %340 = vmatpush.xpose.msra.mxu0 0.0
        %341 = vmatpush.xpose.msra.mxu0 0.0
        %342 = vmatpush.xpose.msra.mxu0 0.0
        %343 = vmatpush.xpose.msra.mxu0 0.0
        %344 = vmatpush.xpose.msra.mxu0 0.0
        %345 = vmatpush.xpose.msra.mxu0 0.0
        %346 = vmatpush.xpose.msra.mxu0 0.0
        %347 = vmatpush.xpose.msra.mxu0 0.0
        %348 = vmatpush.xpose.msra.mxu0 0.0
        %349 = vmatpush.xpose.msra.mxu0 0.0
        %350 = vmatpush.xpose.msra.mxu0 0.0
        %351 = vmatpush.xpose.msra.mxu0 0.0
        %352 = vmatpush.xpose.msra.mxu0 %v336
        %353 = vmatpush.xpose.msra.mxu0 %v333
        %354 = vmatmul.f32.gmra.mxu0 %v330
        %v355 = vpop.f32.mrf.mxu0
        %v356 = vadd.f32 0.0, %v355
        %357 = vdwg.mxu0
        %s358 = smul.u32 %s22, 8
        %v359 = vlaneseq
        %v360 = vshrl.u32 %v359, 7
        %v361 = vstv %s358
        %v362 = vadd.s32 %v361, %v360
        %s363 = smul.u32 %s23, 16
        %v364 = vlaneseq
        %v365 = vand.u32 %v364, 127
        %v366 = vstv %s363
        %v367 = vadd.s32 %v366, %v365
        %vm368 = vcmp.eq.s32.totalorder %v362, %v367
        %v369 = vsel %vm368, -1e+30, %v356
        %v370 = vld [vmem:[#allocation2] sm:$0xff]
        %vm371 = vcmask 130048
        %v372 = vsel %vm371, %v369, -inf
        %373 = vmax.xlane.f32.xlu0 %v372
        %v374 = vpop.xlane.xlu0 %373
        %v375 = vmax.f32 %v370, %v374
        %v376 = vsub.f32 %v370, %v375
        %v377 = vmul.f32 %v376, 1.442695
        %v378 = vpow.pop %v377
        %380 = vset.pattern.permute.xlu0 0
        %381 = vperm.xlu0 %380, %v375
        %v382 = vpop.permute.xlu0 %381
        %v384 = vsub.f32 %v369, %v382
        %v385 = vmul.f32 %v384, 1.442695
        %v386 = vpow.pop %v385
        %v387 = vld [vmem:[#allocation3] sm:$0xff]
        %v388 = vmul.f32 %v378, %v387
        %v389 = vsel %vm371, %v386, 0.0
        %390 = vadd.xlane.f32.xlu0 %v389
        %v391 = vpop.xlane.xlu0 %390
        %v392 = vadd.f32 %v388, %v391
        %vm393 = vcmask 7168
        %394 = vst.msk [vmem:[#allocation3] sm:$0xff] %vm393, %v392
        %395 = vst.msk [vmem:[#allocation2] sm:$0xff] %vm393, %v375
        // Predicated region
        $region49: #{tpu_custom_call.1} parent=31 // pred_check
          %p396 = pneg %p314
        $region50: #{tpu_custom_call.1} parent=31 // pred_check_branch
          %398 = sbr.rel (%p396) target = $region52
        $region51: #{tpu_custom_call.1} parent=31 // pred_region
          %v399 = vld [vmem:[#allocation2] sm:$0xff]
          %v400 = vld [vmem:[#allocation3] sm:$0xff]
          %v401 = vlog2.pop %v400
          %v402 = vmul.f32 %v401, 0.6931472
          %v403 = vadd.f32 %v399, %v402
          %v404 = vld [vmem:[%s253] sm:$0xff]
          %v405 = vmul.f32 %v404, 2.0
          %v406 = vld [vmem:[%s268] sm:$0xff]
          %v407 = vmul.f32 %v405, %v406
          %v408 = vsel %vm328, %v407, 0.0
          %409 = vadd.xlane.f32.xlu0 %v408
          %v410 = vpop.xlane.xlu0 %409
          %v411 = vsub.f32 %v403, %v410
          %412 = vst.msk [vmem:[%s313] sm:$0xff] %vm393, %v411
        $region52: #{tpu_custom_call.1} parent=31 // pred_fallthru
          _
        %p413 = scmp.lt.s32.totalorder %s22, 1
        %s414 = scalar_select %p413, %s22, 1
        %s415 = smul.addr %s414, 8
        %s416 = scalar_lea.vmem %s3, %s415
        // Predicated region
        $region53: #{tpu_custom_call.1} parent=31 // pred_check
          %p417 = pneg %p152
        $region54: #{tpu_custom_call.1} parent=31 // pred_check_branch
          %419 = sbr.rel (%p417) target = $region56
        $region55: #{tpu_custom_call.1} parent=31 // pred_region
          _
        $region56: #{tpu_custom_call.1} parent=31 // pred_fallthru
          _
      $region32: #{tpu_custom_call.1} parent=5 // pred_fallthru
        _
      %p420 = scmp.le.s32.totalorder 2, %s13
      // Predicated region
      $region57: #{tpu_custom_call.1} parent=5 // pred_check
        %p421 = pneg %p420
      $region58: #{tpu_custom_call.1} parent=5 // pred_check_branch
        %423 = sbr.rel (%p421) target = $region60
      $region59: #{tpu_custom_call.1} parent=5 // pred_region
        %s424 = ssub.s32 %s13, 2
        // Predicated region
        $region61: #{tpu_custom_call.1} parent=59 // pred_check
          %p425 = pneg %p158
        $region62: #{tpu_custom_call.1} parent=59 // pred_check_branch
          %427 = sbr.rel (%p425) target = $region64
        $region63: #{tpu_custom_call.1} parent=59 // pred_region
          %p428 = scmp.lt.s32.totalorder %s24, 1
          %s429 = scalar_select %p428, %s24, 1
          %s430 = smul.addr %s429, 8
          %s431 = scalar_lea.vmem %s3, %s430
        $region64: #{tpu_custom_call.1} parent=59 // pred_fallthru
          _
      $region60: #{tpu_custom_call.1} parent=5 // pred_fallthru
        _
    $region6: #{tpu_custom_call.1} parent=1 // loop_footer
      %s17 = sadd.s32 1, %s13
    $region7: #{tpu_custom_call.1} parent=1 // loop_footer_branch
      %12 = sbr.rel target = $region3
    $region8: #{tpu_custom_call.1} parent=1 // loop_exit
      _
    %432 = vsyncpa [#allocation6], 1
    %s433 = scalar_lea.sflag [#allocation6], 1
    %434 = vsyncpa %s433, 1
    %435 = vsyncpa [#allocation8], 1

</llo_original>
